<compile_context>
chip_gen: v7x
topology: tpu7x:2x2x1
jax: 0.10.0
libtpu: 0.0.40
codegen_flags: <defaults>
</compile_context>

<pallas_src>
import jax
import jax.numpy as jnp
from jax import lax
from jax.experimental import pallas as pl
from jax.experimental.pallas import tpu as pltpu

ALPHA = 0.5   # alpha_t == 0.5 exactly -> folded into the wrapper's final scale
GAMMA = 2.0   # exponent is exactly 2 -> explicit square inside the kernel


def _round_up(x, m):
    return ((x + m - 1) // m) * m


def _focal_kernel(nf_max_ref,            # SMEM (nb,) int32 : per-batch-tile max(n_frames)
                  llt_ref,               # SMEM (nb,) int32 : last live frame tile (drives DMA clamp; unused in body)
                  nf_ref,                # VMEM (b_tile, 1) int32
                  pred_ref, true_ref,    # VMEM (b_tile, t_tile)
                  out_ref,               # VMEM (b_tile, 1) f32 : per-row partial SUM for this core slot
                  acc_ref):              # VMEM scratch (b_tile, 128) f32
    del llt_ref
    b = pl.program_id(1)
    t = pl.program_id(2)
    nt_core = pl.num_programs(2)
    gt = pl.program_id(0) * nt_core + t          # global frame-tile index
    t_tile = pred_ref.shape[1]
    tile_start = gt * t_tile

    @pl.when(t == 0)
    def _init():
        acc_ref[...] = jnp.zeros_like(acc_ref)

    # Skip frame tiles fully past every row's valid range in this batch tile.
    # The matching index_map clamp already elided their HBM->VMEM DMA.
    @pl.when(tile_start < nf_max_ref[b])
    def _compute():
        nf = nf_ref[...]                                                   # (b_tile, 1) int32
        col = tile_start + lax.broadcasted_iota(jnp.int32, pred_ref.shape, 1)
        valid = col < nf                                                   # (b_tile, t_tile)

        x = pred_ref[...].astype(jnp.float32)
        y = true_ref[...].astype(jnp.float32)

        # One shared EUP exp feeds both the stable BCE log term and the sigmoid.
        e = jnp.exp(-jnp.abs(x))
        ce = jnp.maximum(x, 0.0) - x * y + jnp.log1p(e)                    # BCE-with-logits
        inv = pl.reciprocal(1.0 + e, approx=False)   # EUP; approx=True if ~1e-3 error ok
        p = jnp.where(x >= 0.0, inv, e * inv)                              # == sigmoid(x)

        # q = 1 - p_t  with  p_t = p*y + (1-p)*(1-y)   ==>   q = y + p - 2*p*y
        q = y + p - 2.0 * (p * y)
        loss = ce * (q * q)                                                # gamma == 2.0
        # Mask AFTER the math: out-of-range / overhang frames contribute zero.
        loss = jnp.where(valid, loss, 0.0)

        # Lane-wise partial sums: pure VALU adds over 128-wide static slices; the
        # single 128->1 cross-lane (XLU) reduce happens once per batch tile.
        part = loss[:, 0:128]
        for k in range(1, t_tile // 128):
            part = part + loss[:, k * 128:(k + 1) * 128]
        acc_ref[...] += part

    @pl.when(t == nt_core - 1)
    def _finalize():
        out_ref[...] = jnp.sum(acc_ref[...], axis=1, keepdims=True)


def masked_frame_loss(pred, true, n_frames, *, b_tile=None, t_tile=None, ncore=None):
    """mean_i( mean_{f < n_frames[i]}( focal_bce(pred[i, f], true[i, f]) ) )."""
    B, T = pred.shape
    nf = jnp.minimum(n_frames.astype(jnp.int32), T)   # torch slicing clamps implicitly

    # ---- tile sizes from a VMEM / per-step budget (NOT input-shape divisibility) ----
    # 2 inputs x 2 pipeline buffers x 128 x 2048 x 4B = 4 MiB -> safe on v5e/v6e/v7x.
    if b_tile is None:
        b_tile = min(_round_up(B, 8), 128)
    else:
        b_tile = _round_up(b_tile, 8)
    if t_tile is None:
        t_tile = min(_round_up(T, 128), 2048)
    else:
        t_tile = _round_up(t_tile, 128)

    nb = pl.cdiv(B, b_tile)
    nt = pl.cdiv(T, t_tile)

    # Split the frame range across two grid-parallel slots when the batch axis
    # alone cannot feed both v7x TensorCores; harmless (one extra step) elsewhere.
    if ncore is None:
        ncore = 2 if (nb == 1 and nt >= 2) else 1
    nt_core = pl.cdiv(nt, ncore)

    # Only the tiny n_frames vector is padded (padded rows -> 0 valid frames);
    # pred/true are consumed as-is via cdiv grids with overhanging boundary blocks.
    B_out = nb * b_tile
    nf_pad = jnp.pad(nf, (0, B_out - B))
    nf_col = nf_pad.reshape(B_out, 1)
    nf_tile_max = nf_pad.reshape(nb, b_tile).max(axis=1)                       # compute skip
    last_live_tile = jnp.maximum((nf_tile_max + t_tile - 1) // t_tile - 1, 0)  # DMA-elision clamp

    def _data_map(c, b, t, nfm, llt):
        # Clamp dead frame tiles to this batch tile's last live tile: a repeated
        # block index makes Pallas skip the HBM->VMEM copy for those grid steps.
        return (b, jnp.minimum(c * nt_core + t, llt[b]))

    grid_spec = pltpu.PrefetchScalarGridSpec(
        num_scalar_prefetch=2,
        grid=(ncore, nb, nt_core),
        in_specs=[
            pl.BlockSpec((b_tile, 1), lambda c, b, t, nfm, llt: (b, 0)),
            pl.BlockSpec((b_tile, t_tile), _data_map),
            pl.BlockSpec((b_tile, t_tile), _data_map),
        ],
        out_specs=pl.BlockSpec((None, b_tile, 1), lambda c, b, t, nfm, llt: (c, b, 0)),
        scratch_shapes=[pltpu.VMEM((b_tile, 128), jnp.float32)],
    )

    partial_sums = pl.pallas_call(
        _focal_kernel,
        out_shape=jax.ShapeDtypeStruct((ncore, B_out, 1), jnp.float32),
        grid_spec=grid_spec,
        compiler_params=pltpu.CompilerParams(
            dimension_semantics=("parallel", "parallel", "arbitrary"),
            vmem_limit_bytes=32 * 1024 * 1024,
        ),
    )(nf_tile_max, last_live_tile, nf_col, pred, true)

    # Combine per-core partial sums, apply alpha (== 0.5 exactly), the per-row
    # mean (max(nf,1) guards empty rows), and the mean over the real rows.
    row_sum = jnp.sum(partial_sums[:, :B, 0], axis=0)                    # (B,)
    per_row = ALPHA * row_sum / jnp.maximum(nf, 1).astype(jnp.float32)
    return jnp.mean(per_row)


def _reference(pred, true, n_frames):
    # pure-JAX reference mirroring the PyTorch loop (sanity check only)
    losses = []
    for i in range(pred.shape[0]):
        f = int(n_frames[i])
        x = pred[i, :f].astype(jnp.float32)
        t = true[i, :f].astype(jnp.float32)
        ce = jnp.maximum(x, 0.0) - x * t + jnp.log1p(jnp.exp(-jnp.abs(x)))
        p = jax.nn.sigmoid(x)
        p_t = p * t + (1.0 - p) * (1.0 - t)
        alpha_t = ALPHA * t + (1.0 - ALPHA) * (1.0 - t)
        losses.append(jnp.mean(alpha_t * ce * (1.0 - p_t) ** GAMMA))
    return jnp.mean(jnp.stack(losses))


if __name__ == "__main__":
    key = jax.random.PRNGKey(0)
    k1, k2 = jax.random.split(key)

    B, T = 4, 384
    pred = jax.random.normal(k1, (B, T), dtype=jnp.float32)
    true = (jax.random.uniform(k2, (B, T)) > 0.5).astype(jnp.float32)
    n_frames = jnp.array([200, 64, 32, 100], dtype=jnp.int32)

    ref = _reference(pred, true, n_frames)

    # t_tile=128 exercises multi-tile accumulation, the dead-tile DMA/compute skip
    # (tiles past frame 200) and the two-way frame split (nb == 1 -> ncore == 2).
    out_small = jax.block_until_ready(masked_frame_loss(pred, true, n_frames, t_tile=128))
    assert jnp.allclose(out_small, ref, rtol=1e-5, atol=1e-6), (out_small, ref)

    # Default budget-driven tiling: one frame tile covering all 384 frames.
    out_default = jax.block_until_ready(masked_frame_loss(pred, true, n_frames))
    assert jnp.allclose(out_default, ref, rtol=1e-5, atol=1e-6), (out_default, ref)

    print("KERNEL_OK")
</pallas_src>

<mosaic_0001>
module attributes {stable_mosaic.version = 11 : i64} {
  func.func @_focal_kernel(%arg0: i32, %arg1: i32, %arg2: i32, %arg3: memref<1xi32, #tpu.memory_space<smem>>, %arg4: memref<1xi32, #tpu.memory_space<smem>>, %arg5: memref<8x1xi32, #tpu.memory_space<vmem>>, %arg6: memref<8x128xf32, #tpu.memory_space<vmem>>, %arg7: memref<8x128xf32, #tpu.memory_space<vmem>>, %arg8: memref<1x8x1xf32, #tpu.memory_space<vmem>>, %arg9: memref<8x128xf32, #tpu.memory_space<vmem>>) attributes {dimension_semantics = [#tpu.dimension_semantics<parallel>, #tpu.dimension_semantics<parallel>, #tpu.dimension_semantics<arbitrary>], iteration_bounds = array<i64: 2, 1, 2>, scalar_prefetch = 2 : i64, scratch_operands = 1 : i64, tpu.core_type = #tpu.core_type<tc>, window_params = [{transform_indices = @transform_0, window_bounds = array<i64: 8, 1>}, {transform_indices = @transform_1, window_bounds = array<i64: 8, 128>}, {transform_indices = @transform_2, window_bounds = array<i64: 8, 128>}, {transform_indices = @transform_3, window_bounds = array<i64: 1, 8, 1>}]} {
    %c2_i32 = arith.constant 2 : i32
    %0 = arith.muli %arg0, %c2_i32 : i32
    %1 = arith.addi %0, %arg2 : i32
    %c128_i32 = arith.constant 128 : i32
    %2 = arith.muli %1, %c128_i32 : i32
    %c0_i32 = arith.constant 0 : i32
    %3 = arith.cmpi eq, %arg2, %c0_i32 : i32
    %4 = arith.extui %3 : i1 to i32
    %c0_i32_0 = arith.constant 0 : i32
    %5 = arith.cmpi ne, %4, %c0_i32_0 : i32
    scf.if %5 {
      %cst = arith.constant 0.000000e+00 : f32
      %14 = vector.broadcast %cst : f32 to vector<8x128xf32>
      %c0 = arith.constant 0 : index
      %c0_3 = arith.constant 0 : index
      %15 = vector.load %arg9[%c0, %c0_3] : memref<8x128xf32, #tpu.memory_space<vmem>>, vector<8x128xf32>
      tpu.vector_store %arg9[%c0, %c0_3], %14 {strides = array<i32>} : memref<8x128xf32, #tpu.memory_space<vmem>>, vector<8x128xf32>,
    } else {
    }
    %6 = arith.index_cast %arg1 : i32 to index
    %7 = memref.load %arg3[%6] : memref<1xi32, #tpu.memory_space<smem>>
    %8 = arith.cmpi slt, %2, %7 : i32
    %9 = arith.extui %8 : i1 to i32
    %c0_i32_1 = arith.constant 0 : i32
    %10 = arith.cmpi ne, %9, %c0_i32_1 : i32
    scf.if %10 {
      %c0 = arith.constant 0 : index
      %c0_3 = arith.constant 0 : index
      %14 = vector.load %arg5[%c0, %c0_3] : memref<8x1xi32, #tpu.memory_space<vmem>>, vector<8x1xi32>
      %15 = tpu.iota {dimensions = array<i32: 1>} : vector<8x128xi32>
      %16 = vector.broadcast %2 : i32 to vector<8x128xi32>
      %17 = arith.addi %16, %15 : vector<8x128xi32>
      %18 = vector.broadcast %14 : vector<8x1xi32> to vector<8x128xi32>
      %19 = arith.cmpi slt, %17, %18 : vector<8x128xi32>
      %c0_4 = arith.constant 0 : index
      %c0_5 = arith.constant 0 : index
      %20 = vector.load %arg6[%c0_4, %c0_5] : memref<8x128xf32, #tpu.memory_space<vmem>>, vector<8x128xf32>
      %c0_6 = arith.constant 0 : index
      %c0_7 = arith.constant 0 : index
      %21 = vector.load %arg7[%c0_6, %c0_7] : memref<8x128xf32, #tpu.memory_space<vmem>>, vector<8x128xf32>
      %22 = math.absf %20 : vector<8x128xf32>
      %cst = arith.constant 0.000000e+00 : f32
      %23 = vector.broadcast %cst : f32 to vector<8x128xf32>
      %24 = arith.subf %23, %22 : vector<8x128xf32>
      %25 = math.exp %24 : vector<8x128xf32>
      %cst_8 = arith.constant 0.000000e+00 : f32
      %26 = vector.broadcast %cst_8 : f32 to vector<8x128xf32>
      %27 = arith.maximumf %20, %26 : vector<8x128xf32>
      %28 = arith.mulf %20, %21 : vector<8x128xf32>
      %29 = arith.subf %27, %28 : vector<8x128xf32>
      %30 = math.log1p %25 : vector<8x128xf32>
      %31 = arith.addf %29, %30 : vector<8x128xf32>
      %cst_9 = arith.constant 1.000000e+00 : f32
      %32 = vector.broadcast %cst_9 : f32 to vector<8x128xf32>
      %33 = arith.addf %32, %25 : vector<8x128xf32>
      %34 = tpu.reciprocal %33 : vector<8x128xf32> -> vector<8x128xf32>
      %cst_10 = arith.constant 0.000000e+00 : f32
      %35 = vector.broadcast %cst_10 : f32 to vector<8x128xf32>
      %36 = arith.cmpf oge, %20, %35 : vector<8x128xf32>
      %37 = arith.mulf %25, %34 : vector<8x128xf32>
      %38 = arith.select %36, %34, %37 : vector<8x128xi1>, vector<8x128xf32>
      %39 = arith.addf %21, %38 : vector<8x128xf32>
      %40 = arith.mulf %38, %21 : vector<8x128xf32>
      %cst_11 = arith.constant 2.000000e+00 : f32
      %41 = vector.broadcast %cst_11 : f32 to vector<8x128xf32>
      %42 = arith.mulf %41, %40 : vector<8x128xf32>
      %43 = arith.subf %39, %42 : vector<8x128xf32>
      %44 = arith.mulf %43, %43 : vector<8x128xf32>
      %45 = arith.mulf %31, %44 : vector<8x128xf32>
      %cst_12 = arith.constant 0.000000e+00 : f32
      %46 = vector.broadcast %cst_12 : f32 to vector<8x128xf32>
      %47 = arith.select %19, %45, %46 : vector<8x128xi1>, vector<8x128xf32>
      %c0_13 = arith.constant 0 : index
      %c0_14 = arith.constant 0 : index
      %48 = vector.load %arg9[%c0_13, %c0_14] : memref<8x128xf32, #tpu.memory_space<vmem>>, vector<8x128xf32>
      %49 = arith.addf %48, %47 : vector<8x128xf32>
      %c0_15 = arith.constant 0 : index
      %c0_16 = arith.constant 0 : index
      %50 = vector.load %arg9[%c0_15, %c0_16] : memref<8x128xf32, #tpu.memory_space<vmem>>, vector<8x128xf32>
      tpu.vector_store %arg9[%c0_15, %c0_16], %49 {strides = array<i32>} : memref<8x128xf32, #tpu.memory_space<vmem>>, vector<8x128xf32>,
    } else {
    }
    %c1_i32 = arith.constant 1 : i32
    %11 = arith.cmpi eq, %arg2, %c1_i32 : i32
    %12 = arith.extui %11 : i1 to i32
    %c0_i32_2 = arith.constant 0 : i32
    %13 = arith.cmpi ne, %12, %c0_i32_2 : i32
    scf.if %13 {
      %c0 = arith.constant 0 : index
      %c0_3 = arith.constant 0 : index
      %14 = vector.load %arg9[%c0, %c0_3] : memref<8x128xf32, #tpu.memory_space<vmem>>, vector<8x128xf32>
      %cst = arith.constant dense<0.000000e+00> : vector<8xf32>
      %15 = vector.multi_reduction <add>, %14, %cst [1] : vector<8x128xf32> to vector<8xf32>
      %16 = vector.shape_cast %15 : vector<8xf32> to vector<8x1xf32>
      %c0_4 = arith.constant 0 : index
      %c0_5 = arith.constant 0 : index
      %c0_6 = arith.constant 0 : index
      %17 = vector.load %arg8[%c0_4, %c0_5, %c0_6] : memref<1x8x1xf32, #tpu.memory_space<vmem>>, vector<1x8x1xf32>
      %18 = vector.shape_cast %17 : vector<1x8x1xf32> to vector<8x1xf32>
      %19 = vector.shape_cast %16 : vector<8x1xf32> to vector<1x8x1xf32>
      tpu.vector_store %arg8[%c0_4, %c0_5, %c0_6], %19 {strides = array<i32>} : memref<1x8x1xf32, #tpu.memory_space<vmem>>, vector<1x8x1xf32>,
    } else {
    }
    return
  }
  func.func @transform_0(%arg0: i32, %arg1: i32, %arg2: i32, %arg3: memref<1xi32, #tpu.memory_space<smem>>, %arg4: memref<1xi32, #tpu.memory_space<smem>>) -> (i32, i32) {
    %c0_i32 = arith.constant 0 : i32
    %c0_i32_0 = arith.constant 0 : i32
    return %arg1, %c0_i32 : i32, i32
  }
  func.func @transform_1(%arg0: i32, %arg1: i32, %arg2: i32, %arg3: memref<1xi32, #tpu.memory_space<smem>>, %arg4: memref<1xi32, #tpu.memory_space<smem>>) -> (i32, i32) {
    %c2_i32 = arith.constant 2 : i32
    %0 = arith.muli %arg0, %c2_i32 : i32
    %1 = arith.addi %0, %arg2 : i32
    %2 = arith.index_cast %arg1 : i32 to index
    %3 = memref.load %arg4[%2] : memref<1xi32, #tpu.memory_space<smem>>
    %4 = arith.minsi %1, %3 : i32
    %c0_i32 = arith.constant 0 : i32
    return %arg1, %4 : i32, i32
  }
  func.func @transform_2(%arg0: i32, %arg1: i32, %arg2: i32, %arg3: memref<1xi32, #tpu.memory_space<smem>>, %arg4: memref<1xi32, #tpu.memory_space<smem>>) -> (i32, i32) {
    %c2_i32 = arith.constant 2 : i32
    %0 = arith.muli %arg0, %c2_i32 : i32
    %1 = arith.addi %0, %arg2 : i32
    %2 = arith.index_cast %arg1 : i32 to index
    %3 = memref.load %arg4[%2] : memref<1xi32, #tpu.memory_space<smem>>
    %4 = arith.minsi %1, %3 : i32
    %c0_i32 = arith.constant 0 : i32
    return %arg1, %4 : i32, i32
  }
  func.func @transform_3(%arg0: i32, %arg1: i32, %arg2: i32, %arg3: memref<1xi32, #tpu.memory_space<smem>>, %arg4: memref<1xi32, #tpu.memory_space<smem>>) -> (i32, i32, i32) {
    %c0_i32 = arith.constant 0 : i32
    %c0_i32_0 = arith.constant 0 : i32
    return %arg0, %arg1, %c0_i32 : i32, i32, i32
  }
}

</mosaic_0001>

<llo_original>
// kernel: tpu_custom_call.1
$region0: #{tpu_custom_call.1}
  #allocation0 [shape = 'u32[]', space=smem, size = 0x4, offset = 0x4, fixed_abs, tag = 'smem constant byte address 0x4 - core index']
  #allocation1 [shape = 'u32[144,128]{1,0:T(1,128)}', space=vmem, size = 0x12000, scoped, tag = 'internal scratch']
  #allocation2 [shape = 'f32[8,128]{1,0:T(8,128)}', space=vmem, size = 0x1000, scoped, tag = 'scratch operand']
  #allocation3 [shape = 's32[1]{0}', space=sflag, size = 0x4, scoped, tag = 'scoped memory for tpu_custom_call.1']
  #allocation4 [shape = 's32[1]{0:T(128)S(6)}', space=smem, size = 0x200, scoped, tag = 'prefetched SMEM operand 0']
  #allocation5 [shape = 's32[1]{0:T(128)S(6)}', space=smem, size = 0x200, scoped, tag = 'prefetched SMEM operand 1']
  %s0 = inlined_call_operand.<no memory space> [shape: s32[1], index: 0, kind: input, shape index: {}]
  %s1 = inlined_call_operand.<no memory space> [shape: s32[1], index: 1, kind: input, shape index: {}]
  %s2 = inlined_call_operand.vmem [shape: s32[8,1], index: 2, kind: input, shape index: {}]
  %s3 = inlined_call_operand.vmem [shape: f32[4,384], index: 3, kind: input, shape index: {}]
  %s4 = inlined_call_operand.vmem [shape: f32[4,384], index: 4, kind: input, shape index: {}]
  %s5 = inlined_call_operand.vmem [shape: f32[2,8,1], index: 5, kind: output, shape index: {}]
  %s6 = sld [smem:[#allocation0]]
  $region125: #{tpu_custom_call.1} parent=0
    _
  %s8 = ssub.s32 1, %s6
  %s9 = scalar_select 0, %s8, %s6
  %10 = sst [smem:[#allocation4]] %s0
  %11 = sst [smem:[#allocation5]] %s1
  $region1: #{tpu_custom_call.1} parent=0
    #allocation6 [shape = 'u8[8192]{0}', space=vmem, size = 0x2000, scoped, tag = 'input window, operand 3']
    #allocation7 [shape = 'u8[8192]{0}', space=vmem, size = 0x2000, scoped, tag = 'input window, operand 4']
    loop: start=0, step=1, limit=6
    $region2: #{tpu_custom_call.1} parent=1 // loop_pre_header
      _
    $region3: #{tpu_custom_call.1} parent=1 // loop_header
      %s13 = sphi 0, %s17
      %p14 = scmp.ge.s32.totalorder %s13, 6
      %s20 = sphi 0, %s39
      %s21 = sphi 0, %s35
      %s22 = sphi 0, %s31
      %s23 = sphi 0, %s20
      %s24 = sphi 0, %s21
      %s25 = sphi 0, %s22
      %s26 = sphi 0, %s23
      %s27 = sphi 0, %s24
      %s28 = sphi 0, %s25
      %s42 = sphi 0, %s44
      %s45 = sphi 0, %s42
      %s46 = sphi 0, %s45
      %s62 = sphi 0, %s46
      %s80 = sphi 0, %s82
      %s83 = sphi 0, %s80
      %s84 = sphi 0, %s83
      %s100 = sphi 0, %s84
      %s118 = sphi 0, %s120
      %s121 = sphi 0, %s118
      %s122 = sphi 0, %s121
      %s138 = sphi 0, %s122
      %s146 = sphi 0, %s148
      %s149 = sphi 0, %s146
      %s150 = sphi 0, %s149
      %s166 = sphi 0, %s150
    $region4: #{tpu_custom_call.1} parent=1 // loop_header_branch
      %16 = sbr.rel (%p14) target = $region8
    $region5: #{tpu_custom_call.1} parent=1 // loop_body
      %s18 = ssub.s32 %s13, 1
      %s19 = ssub.s32 %s13, 2
      %s29 = sadd.s32 1, %s22
      %p30 = scmp.ge.s32.totalorder %s29, 2
      %s31 = scalar_select %p30, 0, %s29
      %s32 = sadd.s32 1, %s21
      %s33 = scalar_select %p30, %s32, %s21
      %p34 = scmp.ge.s32.totalorder %s33, 1
      %s35 = scalar_select %p34, 0, %s33
      %s36 = sadd.s32 1, %s20
      %s37 = scalar_select %p34, %s36, %s20
      %p38 = scmp.ge.s32.totalorder %s37, 2
      %s39 = scalar_select %p38, 0, %s37
      %s40 = ssub.s32 %s21, %s35
      %p41 = scmp.eq.s32.totalorder %s40, 0
      %s43 = sadd.s32 %s42, 1
      %s44 = scalar_select %p41, %s42, %s43
      %p47 = pneg %p41
      %p48 = scmp.eq.s32.totalorder %s13, 3
      %p49 = por %p47, %p48
      %p50 = scmp.ne.s32.totalorder %s42, %s45
      %p51 = scmp.eq.s32.totalorder %s13, 0
      %p52 = por %p50, %p51
      %p53 = scmp.ne.s32.totalorder %s42, %s45
      %p54 = scmp.eq.s32.totalorder %s18, 3
      %p55 = por %p53, %p54
      %p56 = scmp.ne.s32.totalorder %s45, %s46
      %p57 = scmp.eq.s32.totalorder %s18, 0
      %p58 = por %p56, %p57
      %p59 = scmp.ne.s32.totalorder %s45, %s46
      %p60 = scmp.eq.s32.totalorder %s19, 3
      %p61 = por %p59, %p60
      %p63 = scmp.ne.s32.totalorder %s46, %s62
      %p64 = scmp.eq.s32.totalorder %s19, 0
      %p65 = por %p63, %p64
      %s66 = smul.u32 %s20, 2
      %s67 = sadd.s32 %s66, %s22
      %s68 = sld [smem:[#allocation5 + %s21]]
      %p69 = scmp.lt.s32.totalorder %s67, %s68
      %s70 = scalar_select %p69, %s67, %s68
      %s71 = smul.u32 %s39, 2
      %s72 = sadd.s32 %s71, %s31
      %s73 = sld [smem:[#allocation5 + %s35]]
      %p74 = scmp.lt.s32.totalorder %s72, %s73
      %s75 = scalar_select %p74, %s72, %s73
      %s76 = ssub.s32 %s21, %s35
      %s77 = ssub.s32 %s70, %s75
      %s78 = sor.u32 %s76, %s77
      %p79 = scmp.eq.s32.totalorder %s78, 0
      %s81 = sadd.s32 %s80, 1
      %s82 = scalar_select %p79, %s80, %s81
      %p85 = pneg %p79
      %p86 = scmp.eq.s32.totalorder %s13, 3
      %p87 = por %p85, %p86
      %p88 = scmp.ne.s32.totalorder %s80, %s83
      %p89 = scmp.eq.s32.totalorder %s13, 0
      %p90 = por %p88, %p89
      %p91 = scmp.ne.s32.totalorder %s80, %s83
      %p92 = scmp.eq.s32.totalorder %s18, 3
      %p93 = por %p91, %p92
      %p94 = scmp.ne.s32.totalorder %s83, %s84
      %p95 = scmp.eq.s32.totalorder %s18, 0
      %p96 = por %p94, %p95
      %p97 = scmp.ne.s32.totalorder %s83, %s84
      %p98 = scmp.eq.s32.totalorder %s19, 3
      %p99 = por %p97, %p98
      %p101 = scmp.ne.s32.totalorder %s84, %s100
      %p102 = scmp.eq.s32.totalorder %s19, 0
      %p103 = por %p101, %p102
      %s104 = smul.u32 %s20, 2
      %s105 = sadd.s32 %s104, %s22
      %s106 = sld [smem:[#allocation5 + %s21]]
      %p107 = scmp.lt.s32.totalorder %s105, %s106
      %s108 = scalar_select %p107, %s105, %s106
      %s109 = smul.u32 %s39, 2
      %s110 = sadd.s32 %s109, %s31
      %s111 = sld [smem:[#allocation5 + %s35]]
      %p112 = scmp.lt.s32.totalorder %s110, %s111
      %s113 = scalar_select %p112, %s110, %s111
      %s114 = ssub.s32 %s21, %s35
      %s115 = ssub.s32 %s108, %s113
      %s116 = sor.u32 %s114, %s115
      %p117 = scmp.eq.s32.totalorder %s116, 0
      %s119 = sadd.s32 %s118, 1
      %s120 = scalar_select %p117, %s118, %s119
      %p123 = pneg %p117
      %p124 = scmp.eq.s32.totalorder %s13, 3
      %p125 = por %p123, %p124
      %p126 = scmp.ne.s32.totalorder %s118, %s121
      %p127 = scmp.eq.s32.totalorder %s13, 0
      %p128 = por %p126, %p127
      %p129 = scmp.ne.s32.totalorder %s118, %s121
      %p130 = scmp.eq.s32.totalorder %s18, 3
      %p131 = por %p129, %p130
      %p132 = scmp.ne.s32.totalorder %s121, %s122
      %p133 = scmp.eq.s32.totalorder %s18, 0
      %p134 = por %p132, %p133
      %p135 = scmp.ne.s32.totalorder %s121, %s122
      %p136 = scmp.eq.s32.totalorder %s19, 3
      %p137 = por %p135, %p136
      %p139 = scmp.ne.s32.totalorder %s122, %s138
      %p140 = scmp.eq.s32.totalorder %s19, 0
      %p141 = por %p139, %p140
      %s142 = ssub.s32 %s20, %s39
      %s143 = ssub.s32 %s21, %s35
      %s144 = sor.u32 %s142, %s143
      %p145 = scmp.eq.s32.totalorder %s144, 0
      %s147 = sadd.s32 %s146, 1
      %s148 = scalar_select %p145, %s146, %s147
      %p151 = pneg %p145
      %p152 = scmp.eq.s32.totalorder %s13, 3
      %p153 = por %p151, %p152
      %p154 = scmp.ne.s32.totalorder %s146, %s149
      %p155 = scmp.eq.s32.totalorder %s13, 0
      %p156 = por %p154, %p155
      %p157 = scmp.ne.s32.totalorder %s146, %s149
      %p158 = scmp.eq.s32.totalorder %s18, 3
      %p159 = por %p157, %p158
      %p160 = scmp.ne.s32.totalorder %s149, %s150
      %p161 = scmp.eq.s32.totalorder %s18, 0
      %p162 = por %p160, %p161
      %p163 = scmp.ne.s32.totalorder %s149, %s150
      %p164 = scmp.eq.s32.totalorder %s19, 3
      %p165 = por %p163, %p164
      %p167 = scmp.ne.s32.totalorder %s150, %s166
      %p168 = scmp.eq.s32.totalorder %s19, 0
      %p169 = por %p167, %p168
      %p170 = scmp.le.s32.totalorder 1, %s13
      %p171 = scmp.lt.s32.totalorder %s13, 5
      %p172 = pnand %p170, %p171
      %p173 = pneg %p172
      // Predicated region
      $region9: #{tpu_custom_call.1} parent=5 // pred_check
        _
      $region10: #{tpu_custom_call.1} parent=5 // pred_check_branch
        %175 = sbr.rel (%p172) target = $region12
      $region11: #{tpu_custom_call.1} parent=5 // pred_region
        %s176 = ssub.s32 %s13, 1
        // Predicated region
        $region13: #{tpu_custom_call.1} parent=11 // pred_check
          %p177 = pneg %p58
        $region14: #{tpu_custom_call.1} parent=11 // pred_check_branch
          %179 = sbr.rel (%p177) target = $region16
        $region15: #{tpu_custom_call.1} parent=11 // pred_region
          %p180 = scmp.lt.s32.totalorder %s24, 0
          %s181 = scalar_select %p180, %s24, 0
          %s182 = smul.addr %s181, 8
          %s183 = scalar_lea.vmem %s2, %s182
        $region16: #{tpu_custom_call.1} parent=11 // pred_fallthru
          _
      $region12: #{tpu_custom_call.1} parent=5 // pred_fallthru
        _
      %p184 = scmp.lt.s32.totalorder %s13, 4
      // Predicated region
      $region17: #{tpu_custom_call.1} parent=5 // pred_check
        %p185 = pneg %p184
      $region18: #{tpu_custom_call.1} parent=5 // pred_check_branch
        %187 = sbr.rel (%p185) target = $region20
      $region19: #{tpu_custom_call.1} parent=5 // pred_region
        // Predicated region
        $region21: #{tpu_custom_call.1} parent=19 // pred_check
          %p188 = pneg %p90
        $region22: #{tpu_custom_call.1} parent=19 // pred_check_branch
          %190 = sbr.rel (%p188) target = $region24
        $region23: #{tpu_custom_call.1} parent=19 // pred_region
          %s191 = sand.u32 %s80, 1
          %s192 = sand.u32 %s80, 1
          %s193 = smul.addr %s192, 8
          %s194 = scalar_lea.vmem [#allocation6], %s193
          %s195 = smul.u32 %s20, 2
          %s196 = sadd.s32 %s195, %s22
          %s197 = sld [smem:[#allocation5 + %s21]]
          %p198 = scmp.lt.s32.totalorder %s196, %s197
          %s199 = scalar_select %p198, %s196, %s197
          %s200 = smul.u32 2, %s21
          %s201 = ssub.s32 1, %s200
          %s202 = smul.u32 64, %s201
          %p203 = scmp.ne.s32.totalorder 0, %s202
          %s204 = smul.addr %s200, 3
          %s205 = sadd.s32 %s199, %s204
          %s206 = smul.addr %s205, 4
          %s207 = scalar_lea.vmem %s3, %s206
          // Predicated region
          $region25: #{tpu_custom_call.1} parent=23 // pred_check
            %p208 = pneg %p203
          $region26: #{tpu_custom_call.1} parent=23 // pred_check_branch
            %210 = sbr.rel (%p208) target = $region28
          $region27: #{tpu_custom_call.1} parent=23 // pred_region
            // Predicated region
            $region29: #{tpu_custom_call.1} parent=27 // pred_check
              _
            $region30: #{tpu_custom_call.1} parent=27 // pred_check_branch
              %212 = sbr.rel target = $region32
            $region31: #{tpu_custom_call.1} parent=27 // pred_region
              // Predicated region
              $region44: #{tpu_custom_call.1} parent=31 // pred_check
                _
              $region45: #{tpu_custom_call.1} parent=31 // pred_check_branch
                %235 = sbr.rel (0) target = $region47
              $region46: #{tpu_custom_call.1} parent=31 // pred_region
                // While loop
                $region48: #{tpu_custom_call.1} parent=46 // loop_pre_header
                  _
                $region49: #{tpu_custom_call.1} parent=46 // loop_header
                  %s238 = sphi 0, %s240
                  %p239 = scmp.ge.s32.totalorder %s238, %s201
                  %s243 = sphi 0, %s250
                  %s244 = sphi %s207, %s253
                  %s245 = sphi %s194, %s254
                $region50: #{tpu_custom_call.1} parent=46 // loop_header_branch
                  %242 = sbr.rel (%p239) target = $region54
                $region51: #{tpu_custom_call.1} parent=46 // loop_body
                  %v246 = vld [vmem:[%s244] sm:$0xf]
                  %247 = vst [vmem:[%s245] sm:$0xf] %v246
                  %s248 = sadd.s32 1, %s243
                  %p249 = scmp.ge.s32.totalorder %s248, %s201
                  %s250 = scalar_select %p249, 0, %s248
                  %s251 = smul.u32 %s250, 12
                  %s252 = smul.u32 %s250, 4
                  %s253 = scalar_lea.vmem %s207, %s251
                  %s254 = scalar_lea.vmem %s194, %s252 [#allocation6]
                $region52: #{tpu_custom_call.1} parent=46 // loop_footer
                  %s240 = sadd.s32 %s238, 1
                $region53: #{tpu_custom_call.1} parent=46 // loop_footer_branch
                  %237 = sbr.rel target = $region49
                $region54: #{tpu_custom_call.1} parent=46 // loop_exit
                  _
              $region47: #{tpu_custom_call.1} parent=31 // pred_fallthru
                _
            $region32: #{tpu_custom_call.1} parent=27 // pred_fallthru
              _
            // Predicated region
            $region33: #{tpu_custom_call.1} parent=27 // pred_check
              _
            $region34: #{tpu_custom_call.1} parent=27 // pred_check_branch
              %214 = sbr.rel (0) target = $region36
            $region35: #{tpu_custom_call.1} parent=27 // pred_region
              // While loop
              $region37: #{tpu_custom_call.1} parent=35 // loop_pre_header
                _
              $region38: #{tpu_custom_call.1} parent=35 // loop_header
                %s217 = sphi 0, %s219
                %p218 = scmp.ge.s32.totalorder %s217, %s201
                %s222 = sphi 0, %s229
                %s223 = sphi %s207, %s232
                %s224 = sphi %s194, %s233
              $region39: #{tpu_custom_call.1} parent=35 // loop_header_branch
                %221 = sbr.rel (%p218) target = $region43
              $region40: #{tpu_custom_call.1} parent=35 // loop_body
                %v225 = vld [vmem:[%s223] sm:$0xf]
                %226 = vst [vmem:[%s224] sm:$0xf] %v225
                %s227 = sadd.s32 1, %s222
                %p228 = scmp.ge.s32.totalorder %s227, %s201
                %s229 = scalar_select %p228, 0, %s227
                %s230 = smul.u32 %s229, 12
                %s231 = smul.u32 %s229, 4
                %s232 = scalar_lea.vmem %s207, %s230
                %s233 = scalar_lea.vmem %s194, %s231 [#allocation6]
              $region41: #{tpu_custom_call.1} parent=35 // loop_footer
                %s219 = sadd.s32 %s217, 1
              $region42: #{tpu_custom_call.1} parent=35 // loop_footer_branch
                %216 = sbr.rel target = $region38
              $region43: #{tpu_custom_call.1} parent=35 // loop_exit
                _
            $region36: #{tpu_custom_call.1} parent=27 // pred_fallthru
              _
          $region28: #{tpu_custom_call.1} parent=23 // pred_fallthru
            _
          %255 = vnop
        $region24: #{tpu_custom_call.1} parent=19 // pred_fallthru
          _
        // Predicated region
        $region55: #{tpu_custom_call.1} parent=19 // pred_check
          %p256 = pneg %p128
        $region56: #{tpu_custom_call.1} parent=19 // pred_check_branch
          %258 = sbr.rel (%p256) target = $region58
        $region57: #{tpu_custom_call.1} parent=19 // pred_region
          %s259 = sand.u32 %s118, 1
          %s260 = sand.u32 %s118, 1
          %s261 = smul.addr %s260, 8
          %s262 = scalar_lea.vmem [#allocation7], %s261
          %s263 = smul.u32 %s20, 2
          %s264 = sadd.s32 %s263, %s22
          %s265 = sld [smem:[#allocation5 + %s21]]
          %p266 = scmp.lt.s32.totalorder %s264, %s265
          %s267 = scalar_select %p266, %s264, %s265
          %s268 = smul.u32 2, %s21
          %s269 = ssub.s32 1, %s268
          %s270 = smul.u32 64, %s269
          %p271 = scmp.ne.s32.totalorder 0, %s270
          %s272 = smul.addr %s268, 3
          %s273 = sadd.s32 %s267, %s272
          %s274 = smul.addr %s273, 4
          %s275 = scalar_lea.vmem %s4, %s274
          // Predicated region
          $region59: #{tpu_custom_call.1} parent=57 // pred_check
            %p276 = pneg %p271
          $region60: #{tpu_custom_call.1} parent=57 // pred_check_branch
            %278 = sbr.rel (%p276) target = $region62
          $region61: #{tpu_custom_call.1} parent=57 // pred_region
            // Predicated region
            $region63: #{tpu_custom_call.1} parent=61 // pred_check
              _
            $region64: #{tpu_custom_call.1} parent=61 // pred_check_branch
              %280 = sbr.rel target = $region66
            $region65: #{tpu_custom_call.1} parent=61 // pred_region
              // Predicated region
              $region78: #{tpu_custom_call.1} parent=65 // pred_check
                _
              $region79: #{tpu_custom_call.1} parent=65 // pred_check_branch
                %303 = sbr.rel (0) target = $region81
              $region80: #{tpu_custom_call.1} parent=65 // pred_region
                // While loop
                $region82: #{tpu_custom_call.1} parent=80 // loop_pre_header
                  _
                $region83: #{tpu_custom_call.1} parent=80 // loop_header
                  %s306 = sphi 0, %s308
                  %p307 = scmp.ge.s32.totalorder %s306, %s269
                  %s311 = sphi 0, %s318
                  %s312 = sphi %s275, %s321
                  %s313 = sphi %s262, %s322
                $region84: #{tpu_custom_call.1} parent=80 // loop_header_branch
                  %310 = sbr.rel (%p307) target = $region88
                $region85: #{tpu_custom_call.1} parent=80 // loop_body
                  %v314 = vld [vmem:[%s312] sm:$0xf]
                  %315 = vst [vmem:[%s313] sm:$0xf] %v314
                  %s316 = sadd.s32 1, %s311
                  %p317 = scmp.ge.s32.totalorder %s316, %s269
                  %s318 = scalar_select %p317, 0, %s316
                  %s319 = smul.u32 %s318, 12
                  %s320 = smul.u32 %s318, 4
                  %s321 = scalar_lea.vmem %s275, %s319
                  %s322 = scalar_lea.vmem %s262, %s320 [#allocation7]
                $region86: #{tpu_custom_call.1} parent=80 // loop_footer
                  %s308 = sadd.s32 %s306, 1
                $region87: #{tpu_custom_call.1} parent=80 // loop_footer_branch
                  %305 = sbr.rel target = $region83
                $region88: #{tpu_custom_call.1} parent=80 // loop_exit
                  _
              $region81: #{tpu_custom_call.1} parent=65 // pred_fallthru
                _
            $region66: #{tpu_custom_call.1} parent=61 // pred_fallthru
              _
            // Predicated region
            $region67: #{tpu_custom_call.1} parent=61 // pred_check
              _
            $region68: #{tpu_custom_call.1} parent=61 // pred_check_branch
              %282 = sbr.rel (0) target = $region70
            $region69: #{tpu_custom_call.1} parent=61 // pred_region
              // While loop
              $region71: #{tpu_custom_call.1} parent=69 // loop_pre_header
                _
              $region72: #{tpu_custom_call.1} parent=69 // loop_header
                %s285 = sphi 0, %s287
                %p286 = scmp.ge.s32.totalorder %s285, %s269
                %s290 = sphi 0, %s297
                %s291 = sphi %s275, %s300
                %s292 = sphi %s262, %s301
              $region73: #{tpu_custom_call.1} parent=69 // loop_header_branch
                %289 = sbr.rel (%p286) target = $region77
              $region74: #{tpu_custom_call.1} parent=69 // loop_body
                %v293 = vld [vmem:[%s291] sm:$0xf]
                %294 = vst [vmem:[%s292] sm:$0xf] %v293
                %s295 = sadd.s32 1, %s290
                %p296 = scmp.ge.s32.totalorder %s295, %s269
                %s297 = scalar_select %p296, 0, %s295
                %s298 = smul.u32 %s297, 12
                %s299 = smul.u32 %s297, 4
                %s300 = scalar_lea.vmem %s275, %s298
                %s301 = scalar_lea.vmem %s262, %s299 [#allocation7]
              $region75: #{tpu_custom_call.1} parent=69 // loop_footer
                %s287 = sadd.s32 %s285, 1
              $region76: #{tpu_custom_call.1} parent=69 // loop_footer_branch
                %284 = sbr.rel target = $region72
              $region77: #{tpu_custom_call.1} parent=69 // loop_exit
                _
            $region70: #{tpu_custom_call.1} parent=61 // pred_fallthru
              _
          $region62: #{tpu_custom_call.1} parent=57 // pred_fallthru
            _
          %323 = vnop
        $region58: #{tpu_custom_call.1} parent=19 // pred_fallthru
          _
      $region20: #{tpu_custom_call.1} parent=5 // pred_fallthru
        _
      %p324 = scmp.le.s32.totalorder 1, %s13
      %p325 = scmp.lt.s32.totalorder %s13, 5
      %p326 = pnand %p324, %p325
      %p327 = pneg %p326
      // Predicated region
      $region89: #{tpu_custom_call.1} parent=5 // pred_check
        _
      $region90: #{tpu_custom_call.1} parent=5 // pred_check_branch
        %329 = sbr.rel (%p326) target = $region92
      $region91: #{tpu_custom_call.1} parent=5 // pred_region
        %s330 = ssub.s32 %s13, 1
        %s331 = sand.u32 %s83, 1
        %s332 = sand.u32 %s83, 1
        %s333 = smul.addr %s332, 8
        %s334 = scalar_lea.vmem [#allocation6], %s333
        // Predicated region
        $region93: #{tpu_custom_call.1} parent=91 // pred_check
          %p335 = pneg %p96
        $region94: #{tpu_custom_call.1} parent=91 // pred_check_branch
          %337 = sbr.rel (%p335) target = $region96
        $region95: #{tpu_custom_call.1} parent=91 // pred_region
          _
        $region96: #{tpu_custom_call.1} parent=91 // pred_fallthru
          _
        %s338 = sand.u32 %s121, 1
        %s339 = sand.u32 %s121, 1
        %s340 = smul.addr %s339, 8
        %s341 = scalar_lea.vmem [#allocation7], %s340
        // Predicated region
        $region97: #{tpu_custom_call.1} parent=91 // pred_check
          %p342 = pneg %p134
        $region98: #{tpu_custom_call.1} parent=91 // pred_check_branch
          %344 = sbr.rel (%p342) target = $region100
        $region99: #{tpu_custom_call.1} parent=91 // pred_region
          _
        $region100: #{tpu_custom_call.1} parent=91 // pred_fallthru
          _
        %p345 = scmp.lt.s32.totalorder %s24, 0
        %s346 = scalar_select %p345, %s24, 0
        %s347 = smul.addr %s346, 8
        %s348 = scalar_lea.vmem %s2, %s347
        %p349 = pneg %p58
        %p350 = pneg %p55
        %s351 = sand.u32 %s83, 1
        %s352 = sand.u32 %s83, 1
        %s353 = smul.addr %s352, 8
        %s354 = scalar_lea.vmem [#allocation6], %s353
        %p355 = pneg %p96
        %p356 = pneg %p93
        %s357 = sand.u32 %s121, 1
        %s358 = sand.u32 %s121, 1
        %s359 = smul.addr %s358, 8
        %s360 = scalar_lea.vmem [#allocation7], %s359
        %p361 = pneg %p134
        %p362 = pneg %p131
        %p363 = pneg %p162
        %p364 = pneg %p159
        %p365 = scmp.lt.s32.totalorder %s23, 1
        %s366 = scalar_select %p365, %s23, 1
        %p367 = scmp.lt.s32.totalorder %s24, 0
        %s368 = scalar_select %p367, %s24, 0
        %s369 = sadd.s32 %s368, %s366
        %s370 = smul.addr %s369, 8
        %s371 = scalar_lea.vmem %s5, %s370
        %p372 = scmp.lt.s32.totalorder %s24, 0
        %s373 = scalar_select %p372, %s24, 0
        %s374 = smul.addr %s373, 8
        %s375 = scalar_lea.vmem %s2, %s374
        %s376 = smul.u32 %s23, 2
        %s377 = sadd.s32 %s376, %s25
        %s378 = sld [smem:[#allocation5 + %s24]]
        %p379 = scmp.lt.s32.totalorder %s377, %s378
        %s380 = scalar_select %p379, %s377, %s378
        %s381 = smul.u32 2, %s24
        %s382 = ssub.s32 1, %s381
        %s383 = smul.u32 64, %s382
        %s384 = smul.u32 %s23, 2
        %s385 = sadd.s32 %s384, %s25
        %s386 = sld [smem:[#allocation5 + %s24]]
        %p387 = scmp.lt.s32.totalorder %s385, %s386
        %s388 = scalar_select %p387, %s385, %s386
        %s389 = smul.u32 2, %s24
        %s390 = ssub.s32 1, %s389
        %s391 = smul.u32 64, %s390
        %p392 = scmp.lt.s32.totalorder %s23, 1
        %s393 = scalar_select %p392, %s23, 1
        %p394 = scmp.lt.s32.totalorder %s24, 0
        %s395 = scalar_select %p394, %s24, 0
        %s396 = sadd.s32 %s395, %s393
        %s397 = smul.addr %s396, 8
        %s398 = scalar_lea.vmem %s5, %s397
        %s399 = smul.u32 %s23, 2
        %s400 = sadd.s32 %s399, %s25
        %s401 = smul.u32 %s400, 128
        %p402 = scmp.eq.s32.totalorder %s25, 0
        // Predicated region
        $region101: #{tpu_custom_call.1} parent=91 // pred_check
          %p403 = pneg %p402
        $region102: #{tpu_custom_call.1} parent=91 // pred_check_branch
          %405 = sbr.rel (%p403) target = $region104
        $region103: #{tpu_custom_call.1} parent=91 // pred_region
          %406 = vst [vmem:[#allocation2] sm:$0xff] 0.0
        $region104: #{tpu_custom_call.1} parent=91 // pred_fallthru
          _
        %s407 = sld [smem:[#allocation4 + %s24]]
        %p408 = scmp.lt.s32.totalorder %s401, %s407
        // Predicated region
        $region105: #{tpu_custom_call.1} parent=91 // pred_check
          %p409 = pneg %p408
        $region106: #{tpu_custom_call.1} parent=91 // pred_check_branch
          %411 = sbr.rel (%p409) target = $region108
        $region107: #{tpu_custom_call.1} parent=91 // pred_region
          %v412 = vld [vmem:[%s375] sm:$0xff]
          %v413 = vlaneseq
          %v414 = vand.u32 %v413, 127
          %v415 = vstv %s401
          %v416 = vadd.s32 %v415, %v414
          %417 = vset.pattern.permute.xlu0 0
          %418 = vperm.xlu0 %417, %v412
          %v419 = vpop.permute.xlu0 %418
          %vm420 = vcmp.lt.s32.totalorder %v416, %v419
          %v421 = vld [vmem:[%s334] sm:$0xff]
          %v422 = vld [vmem:[%s341] sm:$0xff]
          %v423 = vand.u32 2147483647, %v421
          %v424 = vsub.f32 0.0, %v423
          %v425 = vmul.f32 %v424, 1.442695
          %v426 = vpow.pop %v425
          %v427 = vmax.f32 %v421, 0.0
          %v428 = vmul.f32 %v421, %v422
          %v429 = vsub.f32 %v427, %v428
          %v430 = vadd.f32 %v426, 1.0
          %v431 = vlog2.pop %v430
          %v432 = vmul.f32 %v431, 0.6931472
          %v433 = vmul.f32 -0.5, %v426
          %v434 = vadd.f32 %v433, 1.0
          %v435 = vmul.f32 %v434, %v426
          %v436 = vand.u32 2147483647, %v426
          %vm437 = vcmp.lt.f32.partialorder %v436, 0.0004427343
          %v438 = vsel %vm437, %v435, %v432
          %v439 = vadd.f32 %v429, %v438
          %v440 = vadd.f32 %v426, 1.0
          %v441 = vrcp.pop %v440
          %vm442 = vcmp.ge.f32.partialorder %v421, 0.0
          %v443 = vmul.f32 %v426, %v441
          %v444 = vsel %vm442, %v441, %v443
          %v445 = vadd.f32 %v422, %v444
          %v446 = vmul.f32 %v444, %v422
          %v447 = vmul.f32 %v446, 2.0
          %v448 = vsub.f32 %v445, %v447
          %v449 = vmul.f32 %v448, %v448
          %v450 = vmul.f32 %v439, %v449
          %v451 = vsel %vm420, %v450, 0.0
          %v452 = vld [vmem:[#allocation2] sm:$0xff]
          %v453 = vadd.f32 %v452, %v451
          %454 = vst [vmem:[#allocation2] sm:$0xff] %v453
        $region108: #{tpu_custom_call.1} parent=91 // pred_fallthru
          _
        %p455 = scmp.eq.s32.totalorder %s25, 1
        // Predicated region
        $region109: #{tpu_custom_call.1} parent=91 // pred_check
          %p456 = pneg %p455
        $region110: #{tpu_custom_call.1} parent=91 // pred_check_branch
          %458 = sbr.rel (%p456) target = $region112
        $region111: #{tpu_custom_call.1} parent=91 // pred_region
          %v459 = vld [vmem:[#allocation2] sm:$0xff]
          %460 = vadd.xlane.f32.xlu0 %v459
          %v461 = vpop.xlane.xlu0 %460
          %vm462 = vcmask 7168
          %463 = vst.msk [vmem:[%s398] sm:$0xff] %vm462, %v461
        $region112: #{tpu_custom_call.1} parent=91 // pred_fallthru
          _
        %p464 = scmp.lt.s32.totalorder %s23, 1
        %s465 = scalar_select %p464, %s23, 1
        %p466 = scmp.lt.s32.totalorder %s24, 0
        %s467 = scalar_select %p466, %s24, 0
        %s468 = sadd.s32 %s467, %s465
        %s469 = smul.addr %s468, 8
        %s470 = scalar_lea.vmem %s5, %s469
        // Predicated region
        $region113: #{tpu_custom_call.1} parent=91 // pred_check
          %p471 = pneg %p159
        $region114: #{tpu_custom_call.1} parent=91 // pred_check_branch
          %473 = sbr.rel (%p471) target = $region116
        $region115: #{tpu_custom_call.1} parent=91 // pred_region
          _
        $region116: #{tpu_custom_call.1} parent=91 // pred_fallthru
          _
      $region92: #{tpu_custom_call.1} parent=5 // pred_fallthru
        _
      %p474 = scmp.le.s32.totalorder 2, %s13
      // Predicated region
      $region117: #{tpu_custom_call.1} parent=5 // pred_check
        %p475 = pneg %p474
      $region118: #{tpu_custom_call.1} parent=5 // pred_check_branch
        %477 = sbr.rel (%p475) target = $region120
      $region119: #{tpu_custom_call.1} parent=5 // pred_region
        %s478 = ssub.s32 %s13, 2
        // Predicated region
        $region121: #{tpu_custom_call.1} parent=119 // pred_check
          %p479 = pneg %p165
        $region122: #{tpu_custom_call.1} parent=119 // pred_check_branch
          %481 = sbr.rel (%p479) target = $region124
        $region123: #{tpu_custom_call.1} parent=119 // pred_region
          %p482 = scmp.lt.s32.totalorder %s26, 1
          %s483 = scalar_select %p482, %s26, 1
          %p484 = scmp.lt.s32.totalorder %s27, 0
          %s485 = scalar_select %p484, %s27, 0
          %s486 = sadd.s32 %s485, %s483
          %s487 = smul.addr %s486, 8
          %s488 = scalar_lea.vmem %s5, %s487
        $region124: #{tpu_custom_call.1} parent=119 // pred_fallthru
          _
      $region120: #{tpu_custom_call.1} parent=5 // pred_fallthru
        _
    $region6: #{tpu_custom_call.1} parent=1 // loop_footer
      %s17 = sadd.s32 1, %s13
    $region7: #{tpu_custom_call.1} parent=1 // loop_footer_branch
      %12 = sbr.rel target = $region3
    $region8: #{tpu_custom_call.1} parent=1 // loop_exit
      _

</llo_original>
